<compile_context>
chip_gen: v5e
topology: v5e:2x2
jax: 0.10.0
libtpu: 0.0.40
codegen_flags: <defaults>
</compile_context>

<pallas_src>
import functools
import math

import jax
import jax.numpy as jnp
import numpy as np
from jax.experimental import pallas as pl
from jax.experimental.pallas import tpu as pltpu


# -----------------------------------------------------------------------------
# DCT filter (identical to the PyTorch get_dct_filter) + cached packed weight.
# -----------------------------------------------------------------------------

@functools.lru_cache(maxsize=None)
def _dct_filter_np(height: int) -> np.ndarray:
    dct = np.zeros((height, height), dtype=np.float64)
    for k in range(height):
        for i in range(height):
            base = math.cos(math.pi * (0.5 + i) * k / height) / math.sqrt(height)
            if k != 0:
                base = base * math.sqrt(2)
            dct[k, i] = base
    return dct.astype(np.float32)


def make_dct_filter(height: int) -> jnp.ndarray:
    """DCT basis identical to the PyTorch buffer."""
    return jnp.asarray(_dct_filter_np(height))


def _round_up(x: int, m: int) -> int:
    return -(-x // m) * m


@functools.lru_cache(maxsize=None)
def _packed_dct_weight(height: int, width: int, k_pad: int) -> jnp.ndarray:
    """kron(weight.T, I_W), zero-padded to (k_pad, k_pad), stored as bf16."""
    w = _dct_filter_np(height)
    packed = np.kron(w.T, np.eye(width, dtype=np.float32))
    k = height * width
    if k_pad != k:
        buf = np.zeros((k_pad, k_pad), dtype=np.float32)
        buf[:k, :k] = packed
        packed = buf
    return jnp.asarray(packed, dtype=jnp.bfloat16)


# -----------------------------------------------------------------------------
# Kernels.
# -----------------------------------------------------------------------------

def _packed_matmul_kernel(x_ref, w_ref, o_ref):
    # x_ref: (tm, Kp) rows of flattened (H*W) pixels; w_ref: (Kp, Kp) bf16.
    # bf16 operands (f32 accumulation) keep the W x-inflated matmul memory-bound.
    x = x_ref[...].astype(jnp.bfloat16)            # on-chip VPU cast
    o_ref[...] = jnp.dot(
        x, w_ref[...], preferred_element_type=jnp.float32
    ).astype(o_ref.dtype)


def _direct_y_kernel(w_ref, x_ref, o_ref):
    # w_ref: (H, H); x_ref / o_ref: (H, tw).  out[k, w] = sum_i w[k, i] x[i, w].
    o_ref[...] = jnp.dot(
        w_ref[...].astype(jnp.float32),
        x_ref[...].astype(jnp.float32),
        precision=jax.lax.Precision.HIGHEST,
        preferred_element_type=jnp.float32,
    ).astype(o_ref.dtype)


# -----------------------------------------------------------------------------
# Tiling helpers.
# -----------------------------------------------------------------------------

def _choose_row_tile(M: int, K: int, itemsize: int, target_bytes: int = 4 << 20) -> int:
    """~4 MiB input blocks; force >= 2 (ideally >= 4) grid steps when M allows it
    so the pipeline overlaps and both v7x TensorCores are used."""
    tm = target_bytes // max(1, K * itemsize)
    tm = max(8, min(tm, 8192))
    tm = (tm // 8) * 8
    if M >= 32:
        tm = min(tm, _round_up(-(-M // 4), 8))      # aim for >= 4 grid steps
    elif M > 8:
        tm = min(tm, _round_up(-(-M // 2), 8))      # at least 2 grid steps
    tm = min(tm, _round_up(max(M, 1), 8))
    return max(tm, 8)


def _weight_spec(shape, single_buffer: bool) -> pl.BlockSpec:
    index_map = lambda *_: (0,) * len(shape)
    if single_buffer:
        # Constant index map -> the weight is DMA'd once; Buffered(1) frees the
        # second (unused) VMEM buffer for larger row tiles.
        return pl.BlockSpec(shape, index_map, pipeline_mode=pl.Buffered(1))
    return pl.BlockSpec(shape, index_map)


# -----------------------------------------------------------------------------
# pallas_call wrappers.
# -----------------------------------------------------------------------------

def _packed_call(x2d, w_packed, out_dtype, single_buffer_weight: bool):
    M, Kp = x2d.shape
    itemsize = jnp.dtype(x2d.dtype).itemsize
    tm = _choose_row_tile(M, Kp, itemsize)
    grid = (pl.cdiv(M, tm),)

    cost = pl.CostEstimate(
        flops=2 * M * Kp * Kp,
        transcendentals=0,
        bytes_accessed=2 * M * Kp * itemsize + Kp * Kp * 2,
    )
    return pl.pallas_call(
        _packed_matmul_kernel,
        out_shape=jax.ShapeDtypeStruct((M, Kp), out_dtype),
        grid_spec=pltpu.PrefetchScalarGridSpec(
            num_scalar_prefetch=0,
            grid=grid,
            in_specs=[
                pl.BlockSpec((tm, Kp), lambda i: (i, 0)),
                _weight_spec((Kp, Kp), single_buffer_weight),
            ],
            out_specs=pl.BlockSpec((tm, Kp), lambda i: (i, 0)),
        ),
        compiler_params=pltpu.CompilerParams(
            dimension_semantics=("parallel",),
            vmem_limit_bytes=32 * 1024 * 1024,
        ),
        cost_estimate=cost,
    )(x2d, w_packed)


def _direct_call(x3d, weight, out_dtype, single_buffer_weight: bool):
    M, H, W = x3d.shape
    itemsize = jnp.dtype(x3d.dtype).itemsize
    if W < 128:
        tw = W                                        # full extent, always legal
    else:
        target = (4 << 20) // max(1, H * itemsize)
        tw = max(128, (target // 128) * 128)
        tw = min(tw, (W // 128) * 128)                # 128-aligned, <= W
    grid = (M, pl.cdiv(W, tw))

    cost = pl.CostEstimate(
        flops=2 * M * H * H * W,
        transcendentals=0,
        bytes_accessed=2 * M * H * W * itemsize + H * H * itemsize,
    )
    return pl.pallas_call(
        _direct_y_kernel,
        out_shape=jax.ShapeDtypeStruct((M, H, W), out_dtype),
        grid_spec=pltpu.PrefetchScalarGridSpec(
            num_scalar_prefetch=0,
            grid=grid,
            in_specs=[
                _weight_spec((H, H), single_buffer_weight),
                pl.BlockSpec((None, H, tw), lambda b, j: (b, 0, j)),
            ],
            out_specs=pl.BlockSpec((None, H, tw), lambda b, j: (b, 0, j)),
        ),
        compiler_params=pltpu.CompilerParams(
            dimension_semantics=("parallel", "parallel"),
            vmem_limit_bytes=32 * 1024 * 1024,
        ),
        cost_estimate=cost,
    )(weight, x3d)


# -----------------------------------------------------------------------------
# Public forward.
# -----------------------------------------------------------------------------

def dct2d_spatial_transform_y(
    x: jnp.ndarray,
    weight: jnp.ndarray | None = None,
    *,
    max_packed_weight_bytes: int = 4 << 20,   # v7x-safe (32 MiB scoped VMEM)
) -> jnp.ndarray:
    """result[b, c, k, w] = sum_i x[b, c, i, w] * weight[k, i].

    x: (B, C, H, W). weight: optional (H, H) DCT basis; None uses the cached
    canonical filter of the PyTorch module.
    """
    B, C, H, W = x.shape
    M = B * C
    out_dtype = x.dtype
    K = H * W
    K_pad = _round_up(K, 128)
    packed_bytes = K_pad * K_pad * 2              # bf16 packed weight

    use_packed = (W < 128) and (packed_bytes <= max_packed_weight_bytes)

    if use_packed:
        if weight is None:
            w_packed = _packed_dct_weight(H, W, K_pad)
        else:
            wp = jnp.kron(
                jnp.transpose(weight).astype(jnp.float32),
                jnp.eye(W, dtype=jnp.float32),
            )
            if K_pad != K:
                wp = jnp.pad(wp, ((0, K_pad - K), (0, K_pad - K)))
            w_packed = wp.astype(jnp.bfloat16)

        x2d = x.reshape(M, K)
        if K_pad != K:
            x2d = jnp.pad(x2d, ((0, 0), (0, K_pad - K)))

        out2d = None
        for single_buffer in (True, False):
            try:
                out2d = _packed_call(x2d, w_packed, out_dtype, single_buffer)
                break
            except Exception:
                if not single_buffer:
                    raise
        if K_pad != K:
            out2d = out2d[:, :K]
        return out2d.reshape(B, C, H, W)

    # Direct, lane-dense path: W stays on the lane axis, contract H with (H, H).
    w = make_dct_filter(H) if weight is None else weight
    w = w.astype(jnp.float32)
    x3d = x.reshape(M, H, W)
    out3d = None
    for single_buffer in (True, False):
        try:
            out3d = _direct_call(x3d, w, out_dtype, single_buffer)
            break
        except Exception:
            if not single_buffer:
                raise
    return out3d.reshape(B, C, H, W)


# -----------------------------------------------------------------------------
# Demo / self-test.
# -----------------------------------------------------------------------------

def _reference(x, weight):
    return np.einsum(
        "bciw,ki->bckw",
        np.asarray(x, dtype=np.float64),
        np.asarray(weight, dtype=np.float64),
    )


if __name__ == "__main__":
    key = jax.random.PRNGKey(0)
    k1, k2, k3 = jax.random.split(key, 3)

    # Case 1: module-sized input -> packed path, K = 256 lanes, explicit weight.
    B, C, H, W = 2, 4, 16, 16
    x1 = jax.random.normal(k1, (B, C, H, W), dtype=jnp.float32)
    weight = make_dct_filter(H)
    out1 = jax.block_until_ready(dct2d_spatial_transform_y(x1, weight))
    assert out1.shape == (B, C, H, W)
    np.testing.assert_allclose(
        np.asarray(out1, np.float64), _reference(x1, _dct_filter_np(H)),
        rtol=2e-2, atol=2e-2)  # bf16-operand MXU path

    # Case 2: larger B*C (>= 2 grid steps, partial last block) + non-128 K
    # (K = 192 -> padded to 256), cached host-built packed weight.
    B, C, H, W = 4, 17, 16, 12
    x2 = jax.random.normal(k2, (B, C, H, W), dtype=jnp.float32)
    out2 = jax.block_until_ready(dct2d_spatial_transform_y(x2))
    np.testing.assert_allclose(
        np.asarray(out2, np.float64), _reference(x2, _dct_filter_np(H)),
        rtol=2e-2, atol=2e-2)

    # Case 3: force the direct (W-on-lanes) path used for W >= 128 / big packed
    # weights; f32 HIGHEST-precision so regressions cannot hide.
    x3 = jax.random.normal(k3, (2, 4, 16, 16), dtype=jnp.float32)
    out3 = jax.block_until_ready(
        dct2d_spatial_transform_y(x3, max_packed_weight_bytes=0))
    np.testing.assert_allclose(
        np.asarray(out3, np.float64), _reference(x3, _dct_filter_np(16)),
        rtol=1e-3, atol=1e-3)

    print("KERNEL_OK")
</pallas_src>

<mosaic_0001>
module attributes {stable_mosaic.version = 11 : i64} {
  func.func @_packed_matmul_kernel(%arg0: i32, %arg1: memref<8x256xf32, #tpu.memory_space<vmem>>, %arg2: memref<256x256xbf16, #tpu.memory_space<vmem>>, %arg3: memref<8x256xf32, #tpu.memory_space<vmem>>) attributes {dimension_semantics = [#tpu.dimension_semantics<parallel>], iteration_bounds = array<i64: 1>, scalar_prefetch = 0 : i64, scratch_operands = 0 : i64, tpu.core_type = #tpu.core_type<tc>, window_params = [{transform_indices = @transform_0, window_bounds = array<i64: 8, 256>}, {pipeline_mode = #tpu.pipeline_mode<synchronous>, transform_indices = @transform_1, window_bounds = array<i64: 256, 256>}, {transform_indices = @transform_2, window_bounds = array<i64: 8, 256>}]} {
    %c0 = arith.constant 0 : index
    %c0_0 = arith.constant 0 : index
    %0 = vector.load %arg1[%c0, %c0_0] : memref<8x256xf32, #tpu.memory_space<vmem>>, vector<8x256xf32>
    %1 = arith.truncf %0 : vector<8x256xf32> to vector<8x256xbf16>
    %c0_1 = arith.constant 0 : index
    %c0_2 = arith.constant 0 : index
    %2 = vector.load %arg2[%c0_1, %c0_2] : memref<256x256xbf16, #tpu.memory_space<vmem>>, vector<256x256xbf16>
    %cst = arith.constant dense<0.000000e+00> : vector<8x256xf32>
    %3 = tpu.matmul %1, %2, %cst {dimension_numbers = #tpu.dot_dimension_numbers<[1], [0], [0], [1], [0, 0, 1, 1], [], []>} : vector<8x256xbf16>, vector<256x256xbf16>, vector<8x256xf32> -> vector<8x256xf32>
    %c0_3 = arith.constant 0 : index
    %c0_4 = arith.constant 0 : index
    %4 = vector.load %arg3[%c0_3, %c0_4] : memref<8x256xf32, #tpu.memory_space<vmem>>, vector<8x256xf32>
    tpu.vector_store %arg3[%c0_3, %c0_4], %3 {strides = array<i32>} : memref<8x256xf32, #tpu.memory_space<vmem>>, vector<8x256xf32>,
    return
  }
  func.func @transform_0(%arg0: i32) -> (i32, i32) {
    %c0_i32 = arith.constant 0 : i32
    %c0_i32_0 = arith.constant 0 : i32
    return %arg0, %c0_i32 : i32, i32
  }
  func.func @transform_1(%arg0: i32) -> (i32, i32) {
    %c0_i32 = arith.constant 0 : i32
    %c0_i32_0 = arith.constant 0 : i32
    %c0_i32_1 = arith.constant 0 : i32
    return %c0_i32, %c0_i32_0 : i32, i32
  }
  func.func @transform_2(%arg0: i32) -> (i32, i32) {
    %c0_i32 = arith.constant 0 : i32
    %c0_i32_0 = arith.constant 0 : i32
    return %arg0, %c0_i32 : i32, i32
  }
}

module attributes {stable_mosaic.version = 11 : i64} {
  func.func @_packed_matmul_kernel(%arg0: i32, %arg1: memref<8x256xf32, #tpu.memory_space<vmem>>, %arg2: memref<256x256xbf16, #tpu.memory_space<vmem>>, %arg3: memref<8x256xf32, #tpu.memory_space<vmem>>) attributes {dimension_semantics = [#tpu.dimension_semantics<parallel>], iteration_bounds = array<i64: 1>, scalar_prefetch = 0 : i64, scratch_operands = 0 : i64, tpu.core_type = #tpu.core_type<tc>, window_params = [{transform_indices = @transform_0, window_bounds = array<i64: 8, 256>}, {pipeline_mode = #tpu.pipeline_mode<synchronous>, transform_indices = @transform_1, window_bounds = array<i64: 256, 256>}, {transform_indices = @transform_2, window_bounds = array<i64: 8, 256>}]} {
    %c0 = arith.constant 0 : index
    %c0_0 = arith.constant 0 : index
    %0 = vector.load %arg1[%c0, %c0_0] : memref<8x256xf32, #tpu.memory_space<vmem>>, vector<8x256xf32>
    %1 = arith.truncf %0 : vector<8x256xf32> to vector<8x256xbf16>
    %c0_1 = arith.constant 0 : index
    %c0_2 = arith.constant 0 : index
    %2 = vector.load %arg2[%c0_1, %c0_2] : memref<256x256xbf16, #tpu.memory_space<vmem>>, vector<256x256xbf16>
    %cst = arith.constant dense<0.000000e+00> : vector<8x256xf32>
    %3 = tpu.matmul %1, %2, %cst {dimension_numbers = #tpu.dot_dimension_numbers<[1], [0], [0], [1], [0, 0, 1, 1], [], []>} : vector<8x256xbf16>, vector<256x256xbf16>, vector<8x256xf32> -> vector<8x256xf32>
    %c0_3 = arith.constant 0 : index
    %c0_4 = arith.constant 0 : index
    %4 = vector.load %arg3[%c0_3, %c0_4] : memref<8x256xf32, #tpu.memory_space<vmem>>, vector<8x256xf32>
    tpu.vector_store %arg3[%c0_3, %c0_4], %3 {strides = array<i32>} : memref<8x256xf32, #tpu.memory_space<vmem>>, vector<8x256xf32>,
    return
  }
  func.func @transform_0(%arg0: i32) -> (i32, i32) {
    %c0_i32 = arith.constant 0 : i32
    %c0_i32_0 = arith.constant 0 : i32
    return %arg0, %c0_i32 : i32, i32
  }
  func.func @transform_1(%arg0: i32) -> (i32, i32) {
    %c0_i32 = arith.constant 0 : i32
    %c0_i32_0 = arith.constant 0 : i32
    %c0_i32_1 = arith.constant 0 : i32
    return %c0_i32, %c0_i32_0 : i32, i32
  }
  func.func @transform_2(%arg0: i32) -> (i32, i32) {
    %c0_i32 = arith.constant 0 : i32
    %c0_i32_0 = arith.constant 0 : i32
    return %arg0, %c0_i32 : i32, i32
  }
}

</mosaic_0001>

<llo_original>
// kernel: tpu_custom_call.1
$region0: #{tpu_custom_call.1}
  #allocation0 [shape = 'u32[]', space=smem, size = 0x4, offset = 0x4, fixed_abs, tag = 'smem constant byte address 0x4 - core index']
  #allocation1 [shape = 'u32[72,128]{1,0:T(1,128)}', space=vmem, size = 0x9000, scoped, tag = 'internal scratch']
  %s0 = inlined_call_operand.hbm [shape: f32[8,256], index: 0, kind: input, shape index: {}]
  %s1 = inlined_call_operand.hbm [shape: bf16[256,256], index: 1, kind: input, shape index: {}]
  %s2 = inlined_call_operand.hbm [shape: f32[8,256], index: 2, kind: output, shape index: {}]
  %s3 = sld [smem:[#allocation0]]
  $region26: #{tpu_custom_call.1} parent=0
    _
  %s5 = ssub.s32 1, %s3
  %s6 = scalar_select 0, %s5, %s3
  $region1: #{tpu_custom_call.1} parent=0
    #allocation2 [shape = 'u8[8192]{0}', space=vmem, size = 0x2000, scoped, tag = 'input window, operand 0, single buffered']
    #allocation3 [shape = 's32[1]{0}', space=sflag, size = 0x4, scoped, tag = 'scoped memory for tpu_custom_call.1']
    #allocation4 [shape = 's32[1]{0}', space=sflag, size = 0x4, scoped, tag = 'scoped memory for tpu_custom_call.1']
    #allocation5 [shape = 'u8[131072]{0}', space=vmem, size = 0x20000, scoped, tag = 'input window, operand 1, single buffered']
    #allocation6 [shape = 's32[1]{0}', space=sflag, size = 0x4, scoped, tag = 'scoped memory for tpu_custom_call.1']
    #allocation7 [shape = 'u8[8192]{0}', space=vmem, size = 0x2000, scoped, tag = 'output window, operand 0, single buffered']
    %7 = vsyncpa [#allocation3], 0
    %8 = vsyncpa [#allocation6], 0
    %9 = vsyncpa [#allocation4], 0
    // Predicated region
    $region2: #{tpu_custom_call.1} parent=1 // pred_check
      _
    $region3: #{tpu_custom_call.1} parent=1 // pred_check_branch
      %11 = sbr.rel (0) target = $region5
    $region4: #{tpu_custom_call.1} parent=1 // pred_region
      %13 = vsyncadd [#allocation3], 0
      %s15 = sshll.u32 %s0, 4
      %s16 = int_to_ptr.hbm [resolvable:$true] %s15
      %s17 = sshll.u32 [#allocation2], 4
      %s18 = int_to_ptr.vmem [resolvable:$true] %s17
      %20 = dma.hbm_to_vmem [thread:$0]  %s16, 256, %s18, [#allocation3]
    $region5: #{tpu_custom_call.1} parent=1 // pred_fallthru
      _
    // Predicated region
    $region6: #{tpu_custom_call.1} parent=1 // pred_check
      _
    $region7: #{tpu_custom_call.1} parent=1 // pred_check_branch
      %22 = sbr.rel (0) target = $region9
    $region8: #{tpu_custom_call.1} parent=1 // pred_region
      %24 = vsyncadd [#allocation6], 0
      %s25 = sshll.u32 %s1, 4
      %s26 = int_to_ptr.hbm [resolvable:$true] %s25
      %s27 = sshll.u32 [#allocation5], 4
      %s28 = int_to_ptr.vmem [resolvable:$true] %s27
      %33 = dma.hbm_to_vmem [thread:$0]  %s26, 4096, %s28, [#allocation6], 128, 128, 8
    $region9: #{tpu_custom_call.1} parent=1 // pred_fallthru
      _
    // Predicated region
    $region10: #{tpu_custom_call.1} parent=1 // pred_check
      _
    $region11: #{tpu_custom_call.1} parent=1 // pred_check_branch
      %35 = sbr.rel (0) target = $region13
    $region12: #{tpu_custom_call.1} parent=1 // pred_region
      %37 = dma.done [#allocation3], 256
    $region13: #{tpu_custom_call.1} parent=1 // pred_fallthru
      _
    // Predicated region
    $region14: #{tpu_custom_call.1} parent=1 // pred_check
      _
    $region15: #{tpu_custom_call.1} parent=1 // pred_check_branch
      %39 = sbr.rel (0) target = $region17
    $region16: #{tpu_custom_call.1} parent=1 // pred_region
      %41 = dma.done [#allocation6], 4096
    $region17: #{tpu_custom_call.1} parent=1 // pred_fallthru
      _
    %v42 = vld [vmem:[#allocation2] sm:$0xff]
    %v43 = vld [vmem:[#allocation2 + $0x8] sm:$0xff]
    %v44 = vpack.c.bf16 %v42, %v42
    %v45 = vpack.c.bf16 %v43, %v43
    %v46 = vld [vmem:[#allocation5] sm:$0xff]
    %v47 = vld [vmem:[#allocation5 + $0x8] sm:$0xff]
    %v48 = vld [vmem:[#allocation5 + $0x10] sm:$0xff]
    %v49 = vld [vmem:[#allocation5 + $0x18] sm:$0xff]
    %v50 = vld [vmem:[#allocation5 + $0x20] sm:$0xff]
    %v51 = vld [vmem:[#allocation5 + $0x28] sm:$0xff]
    %v52 = vld [vmem:[#allocation5 + $0x30] sm:$0xff]
    %v53 = vld [vmem:[#allocation5 + $0x38] sm:$0xff]
    %v54 = vld [vmem:[#allocation5 + $0x40] sm:$0xff]
    %v55 = vld [vmem:[#allocation5 + $0x48] sm:$0xff]
    %v56 = vld [vmem:[#allocation5 + $0x50] sm:$0xff]
    %v57 = vld [vmem:[#allocation5 + $0x58] sm:$0xff]
    %v58 = vld [vmem:[#allocation5 + $0x60] sm:$0xff]
    %v59 = vld [vmem:[#allocation5 + $0x68] sm:$0xff]
    %v60 = vld [vmem:[#allocation5 + $0x70] sm:$0xff]
    %v61 = vld [vmem:[#allocation5 + $0x78] sm:$0xff]
    %v62 = vld [vmem:[#allocation5 + $0x80] sm:$0xff]
    %v63 = vld [vmem:[#allocation5 + $0x88] sm:$0xff]
    %v64 = vld [vmem:[#allocation5 + $0x90] sm:$0xff]
    %v65 = vld [vmem:[#allocation5 + $0x98] sm:$0xff]
    %v66 = vld [vmem:[#allocation5 + $0xa0] sm:$0xff]
    %v67 = vld [vmem:[#allocation5 + $0xa8] sm:$0xff]
    %v68 = vld [vmem:[#allocation5 + $0xb0] sm:$0xff]
    %v69 = vld [vmem:[#allocation5 + $0xb8] sm:$0xff]
    %v70 = vld [vmem:[#allocation5 + $0xc0] sm:$0xff]
    %v71 = vld [vmem:[#allocation5 + $0xc8] sm:$0xff]
    %v72 = vld [vmem:[#allocation5 + $0xd0] sm:$0xff]
    %v73 = vld [vmem:[#allocation5 + $0xd8] sm:$0xff]
    %v74 = vld [vmem:[#allocation5 + $0xe0] sm:$0xff]
    %v75 = vld [vmem:[#allocation5 + $0xe8] sm:$0xff]
    %v76 = vld [vmem:[#allocation5 + $0xf0] sm:$0xff]
    %v77 = vld [vmem:[#allocation5 + $0xf8] sm:$0xff]
    %v110 = vunpack.c.l.b16 %v46
    %v111 = vunpack.c.h.b16 %v46
    %v112 = vunpack.c.l.b16 %v47
    %v113 = vunpack.c.h.b16 %v47
    %v114 = vunpack.c.l.b16 %v48
    %v115 = vunpack.c.h.b16 %v48
    %v116 = vunpack.c.l.b16 %v49
    %v117 = vunpack.c.h.b16 %v49
    %v118 = vunpack.c.l.b16 %v50
    %v119 = vunpack.c.h.b16 %v50
    %v120 = vunpack.c.l.b16 %v51
    %v121 = vunpack.c.h.b16 %v51
    %v122 = vunpack.c.l.b16 %v52
    %v123 = vunpack.c.h.b16 %v52
    %v124 = vunpack.c.l.b16 %v53
    %v125 = vunpack.c.h.b16 %v53
    %v126 = vunpack.c.l.b16 %v54
    %v127 = vunpack.c.h.b16 %v54
    %v128 = vunpack.c.l.b16 %v55
    %v129 = vunpack.c.h.b16 %v55
    %v130 = vunpack.c.l.b16 %v56
    %v131 = vunpack.c.h.b16 %v56
    %v132 = vunpack.c.l.b16 %v57
    %v133 = vunpack.c.h.b16 %v57
    %v134 = vunpack.c.l.b16 %v58
    %v135 = vunpack.c.h.b16 %v58
    %v136 = vunpack.c.l.b16 %v59
    %v137 = vunpack.c.h.b16 %v59
    %v138 = vunpack.c.l.b16 %v60
    %v139 = vunpack.c.h.b16 %v60
    %v140 = vunpack.c.l.b16 %v61
    %v141 = vunpack.c.h.b16 %v61
    %v142 = vunpack.c.l.b16 %v62
    %v143 = vunpack.c.h.b16 %v62
    %v144 = vunpack.c.l.b16 %v63
    %v145 = vunpack.c.h.b16 %v63
    %v146 = vunpack.c.l.b16 %v64
    %v147 = vunpack.c.h.b16 %v64
    %v148 = vunpack.c.l.b16 %v65
    %v149 = vunpack.c.h.b16 %v65
    %v150 = vunpack.c.l.b16 %v66
    %v151 = vunpack.c.h.b16 %v66
    %v152 = vunpack.c.l.b16 %v67
    %v153 = vunpack.c.h.b16 %v67
    %v154 = vunpack.c.l.b16 %v68
    %v155 = vunpack.c.h.b16 %v68
    %v156 = vunpack.c.l.b16 %v69
    %v157 = vunpack.c.h.b16 %v69
    %v158 = vunpack.c.l.b16 %v70
    %v159 = vunpack.c.h.b16 %v70
    %v160 = vunpack.c.l.b16 %v71
    %v161 = vunpack.c.h.b16 %v71
    %v162 = vunpack.c.l.b16 %v72
    %v163 = vunpack.c.h.b16 %v72
    %v164 = vunpack.c.l.b16 %v73
    %v165 = vunpack.c.h.b16 %v73
    %v166 = vunpack.c.l.b16 %v74
    %v167 = vunpack.c.h.b16 %v74
    %v168 = vunpack.c.l.b16 %v75
    %v169 = vunpack.c.h.b16 %v75
    %v170 = vunpack.c.l.b16 %v76
    %v171 = vunpack.c.h.b16 %v76
    %v172 = vunpack.c.l.b16 %v77
    %v173 = vunpack.c.h.b16 %v77
    %v174 = vpack.c.b16 %v112, %v110
    %v175 = vpack.c.b16 %v113, %v111
    %v176 = vpack.c.b16 %v116, %v114
    %v177 = vpack.c.b16 %v117, %v115
    %v178 = vpack.c.b16 %v120, %v118
    %v179 = vpack.c.b16 %v121, %v119
    %v180 = vpack.c.b16 %v124, %v122
    %v181 = vpack.c.b16 %v125, %v123
    %v182 = vpack.c.b16 %v128, %v126
    %v183 = vpack.c.b16 %v129, %v127
    %v184 = vpack.c.b16 %v132, %v130
    %v185 = vpack.c.b16 %v133, %v131
    %v186 = vpack.c.b16 %v136, %v134
    %v187 = vpack.c.b16 %v137, %v135
    %v188 = vpack.c.b16 %v140, %v138
    %v189 = vpack.c.b16 %v141, %v139
    %v190 = vpack.c.b16 %v144, %v142
    %v191 = vpack.c.b16 %v145, %v143
    %v192 = vpack.c.b16 %v148, %v146
    %v193 = vpack.c.b16 %v149, %v147
    %v194 = vpack.c.b16 %v152, %v150
    %v195 = vpack.c.b16 %v153, %v151
    %v196 = vpack.c.b16 %v156, %v154
    %v197 = vpack.c.b16 %v157, %v155
    %v198 = vpack.c.b16 %v160, %v158
    %v199 = vpack.c.b16 %v161, %v159
    %v200 = vpack.c.b16 %v164, %v162
    %v201 = vpack.c.b16 %v165, %v163
    %v202 = vpack.c.b16 %v168, %v166
    %v203 = vpack.c.b16 %v169, %v167
    %v204 = vpack.c.b16 %v172, %v170
    %v205 = vpack.c.b16 %v173, %v171
    %238 = vmatpush.bf16.msra.mxu0 %v188
    %239 = vmatpush.bf16.msra.mxu0 %v186
    %240 = vmatpush.bf16.msra.mxu0 %v184
    %241 = vmatpush.bf16.msra.mxu0 %v182
    %242 = vmatpush.bf16.msra.mxu0 %v180
    %243 = vmatpush.bf16.msra.mxu0 %v178
    %244 = vmatpush.bf16.msra.mxu0 %v176
    %245 = vmatpush.bf16.msra.mxu0 %v174
    %246 = vmatmul.bf16.gmra.mxu0 %v44
    %v247 = vpop.f32.mrf.mxu0
    %v248 = vadd.f32 0.0, %v247
    %v249 = vpop.f32.mrf.mxu0
    %250 = vdwg.mxu0
    %251 = vmatpush.bf16.msra.mxu0 %v204
    %252 = vmatpush.bf16.msra.mxu0 %v202
    %253 = vmatpush.bf16.msra.mxu0 %v200
    %254 = vmatpush.bf16.msra.mxu0 %v198
    %255 = vmatpush.bf16.msra.mxu0 %v196
    %256 = vmatpush.bf16.msra.mxu0 %v194
    %257 = vmatpush.bf16.msra.mxu0 %v192
    %258 = vmatpush.bf16.msra.mxu0 %v190
    %259 = vmatmul.bf16.gmra.mxu0 %v45
    %v260 = vpop.f32.mrf.mxu0
    %v261 = vadd.f32 %v248, %v260
    %v262 = vpop.f32.mrf.mxu0
    %263 = vdwg.mxu0
    %264 = vmatpush.bf16.msra.mxu0 %v189
    %265 = vmatpush.bf16.msra.mxu0 %v187
    %266 = vmatpush.bf16.msra.mxu0 %v185
    %267 = vmatpush.bf16.msra.mxu0 %v183
    %268 = vmatpush.bf16.msra.mxu0 %v181
    %269 = vmatpush.bf16.msra.mxu0 %v179
    %270 = vmatpush.bf16.msra.mxu0 %v177
    %271 = vmatpush.bf16.msra.mxu0 %v175
    %272 = vmatmul.bf16.gmra.mxu0 %v44
    %v273 = vpop.f32.mrf.mxu0
    %v274 = vadd.f32 0.0, %v273
    %v275 = vpop.f32.mrf.mxu0
    %276 = vdwg.mxu0
    %277 = vmatpush.bf16.msra.mxu0 %v205
    %278 = vmatpush.bf16.msra.mxu0 %v203
    %279 = vmatpush.bf16.msra.mxu0 %v201
    %280 = vmatpush.bf16.msra.mxu0 %v199
    %281 = vmatpush.bf16.msra.mxu0 %v197
    %282 = vmatpush.bf16.msra.mxu0 %v195
    %283 = vmatpush.bf16.msra.mxu0 %v193
    %284 = vmatpush.bf16.msra.mxu0 %v191
    %285 = vmatmul.bf16.gmra.mxu0 %v45
    %v286 = vpop.f32.mrf.mxu0
    %v287 = vadd.f32 %v274, %v286
    %v288 = vpop.f32.mrf.mxu0
    %289 = vdwg.mxu0
    %290 = vst [vmem:[#allocation7] sm:$0xff] %v261
    %291 = vst [vmem:[#allocation7 + $0x8] sm:$0xff] %v287
    // Predicated region
    $region18: #{tpu_custom_call.1} parent=1 // pred_check
      _
    $region19: #{tpu_custom_call.1} parent=1 // pred_check_branch
      %293 = sbr.rel (0) target = $region21
    $region20: #{tpu_custom_call.1} parent=1 // pred_region
      %295 = vsyncadd [#allocation4], 0
      %s297 = sshll.u32 [#allocation7], 4
      %s298 = int_to_ptr.vmem [resolvable:$true] %s297
      %s299 = sshll.u32 %s2, 4
      %s300 = int_to_ptr.hbm [resolvable:$true] %s299
      %302 = dma.vmem_to_hbm [thread:$0]  %s298, 256, %s300, [#allocation4]
    $region21: #{tpu_custom_call.1} parent=1 // pred_fallthru
      _
    // Predicated region
    $region22: #{tpu_custom_call.1} parent=1 // pred_check
      _
    $region23: #{tpu_custom_call.1} parent=1 // pred_check_branch
      %304 = sbr.rel (0) target = $region25
    $region24: #{tpu_custom_call.1} parent=1 // pred_region
      %306 = dma.done [#allocation4], 256
    $region25: #{tpu_custom_call.1} parent=1 // pred_fallthru
      _
    %307 = vsyncpa [#allocation3], 1
    %308 = vsyncpa [#allocation6], 1
    %309 = vsyncpa [#allocation4], 1

// kernel: tpu_custom_call.1
$region0: #{tpu_custom_call.1}
  #allocation0 [shape = 'u32[]', space=smem, size = 0x4, offset = 0x4, fixed_abs, tag = 'smem constant byte address 0x4 - core index']
  #allocation1 [shape = 'u32[72,128]{1,0:T(1,128)}', space=vmem, size = 0x9000, scoped, tag = 'internal scratch']
  %s0 = inlined_call_operand.hbm [shape: f32[8,256], index: 0, kind: input, shape index: {}]
  %s1 = inlined_call_operand.hbm [shape: bf16[256,256], index: 1, kind: input, shape index: {}]
  %s2 = inlined_call_operand.hbm [shape: f32[8,256], index: 2, kind: output, shape index: {}]
  %s3 = sld [smem:[#allocation0]]
  $region26: #{tpu_custom_call.1} parent=0
    _
  %s5 = ssub.s32 1, %s3
  %s6 = scalar_select 0, %s5, %s3
  $region1: #{tpu_custom_call.1} parent=0
    #allocation2 [shape = 'u8[8192]{0}', space=vmem, size = 0x2000, scoped, tag = 'input window, operand 0, single buffered']
    #allocation3 [shape = 's32[1]{0}', space=sflag, size = 0x4, scoped, tag = 'scoped memory for tpu_custom_call.1']
    #allocation4 [shape = 's32[1]{0}', space=sflag, size = 0x4, scoped, tag = 'scoped memory for tpu_custom_call.1']
    #allocation5 [shape = 'u8[131072]{0}', space=vmem, size = 0x20000, scoped, tag = 'input window, operand 1, single buffered']
    #allocation6 [shape = 's32[1]{0}', space=sflag, size = 0x4, scoped, tag = 'scoped memory for tpu_custom_call.1']
    #allocation7 [shape = 'u8[8192]{0}', space=vmem, size = 0x2000, scoped, tag = 'output window, operand 0, single buffered']
    %7 = vsyncpa [#allocation3], 0
    %8 = vsyncpa [#allocation6], 0
    %9 = vsyncpa [#allocation4], 0
    // Predicated region
    $region2: #{tpu_custom_call.1} parent=1 // pred_check
      _
    $region3: #{tpu_custom_call.1} parent=1 // pred_check_branch
      %11 = sbr.rel (0) target = $region5
    $region4: #{tpu_custom_call.1} parent=1 // pred_region
      %13 = vsyncadd [#allocation3], 0
      %s15 = sshll.u32 %s0, 4
      %s16 = int_to_ptr.hbm [resolvable:$true] %s15
      %s17 = sshll.u32 [#allocation2], 4
      %s18 = int_to_ptr.vmem [resolvable:$true] %s17
      %20 = dma.hbm_to_vmem [thread:$0]  %s16, 256, %s18, [#allocation3]
    $region5: #{tpu_custom_call.1} parent=1 // pred_fallthru
      _
    // Predicated region
    $region6: #{tpu_custom_call.1} parent=1 // pred_check
      _
    $region7: #{tpu_custom_call.1} parent=1 // pred_check_branch
      %22 = sbr.rel (0) target = $region9
    $region8: #{tpu_custom_call.1} parent=1 // pred_region
      %24 = vsyncadd [#allocation6], 0
      %s25 = sshll.u32 %s1, 4
      %s26 = int_to_ptr.hbm [resolvable:$true] %s25
      %s27 = sshll.u32 [#allocation5], 4
      %s28 = int_to_ptr.vmem [resolvable:$true] %s27
      %33 = dma.hbm_to_vmem [thread:$0]  %s26, 4096, %s28, [#allocation6], 128, 128, 8
    $region9: #{tpu_custom_call.1} parent=1 // pred_fallthru
      _
    // Predicated region
    $region10: #{tpu_custom_call.1} parent=1 // pred_check
      _
    $region11: #{tpu_custom_call.1} parent=1 // pred_check_branch
      %35 = sbr.rel (0) target = $region13
    $region12: #{tpu_custom_call.1} parent=1 // pred_region
      %37 = dma.done [#allocation3], 256
    $region13: #{tpu_custom_call.1} parent=1 // pred_fallthru
      _
    // Predicated region
    $region14: #{tpu_custom_call.1} parent=1 // pred_check
      _
    $region15: #{tpu_custom_call.1} parent=1 // pred_check_branch
      %39 = sbr.rel (0) target = $region17
    $region16: #{tpu_custom_call.1} parent=1 // pred_region
      %41 = dma.done [#allocation6], 4096
    $region17: #{tpu_custom_call.1} parent=1 // pred_fallthru
      _
    %v42 = vld [vmem:[#allocation2] sm:$0xff]
    %v43 = vld [vmem:[#allocation2 + $0x8] sm:$0xff]
    %v44 = vpack.c.bf16 %v42, %v42
    %v45 = vpack.c.bf16 %v43, %v43
    %v46 = vld [vmem:[#allocation5] sm:$0xff]
    %v47 = vld [vmem:[#allocation5 + $0x8] sm:$0xff]
    %v48 = vld [vmem:[#allocation5 + $0x10] sm:$0xff]
    %v49 = vld [vmem:[#allocation5 + $0x18] sm:$0xff]
    %v50 = vld [vmem:[#allocation5 + $0x20] sm:$0xff]
    %v51 = vld [vmem:[#allocation5 + $0x28] sm:$0xff]
    %v52 = vld [vmem:[#allocation5 + $0x30] sm:$0xff]
    %v53 = vld [vmem:[#allocation5 + $0x38] sm:$0xff]
    %v54 = vld [vmem:[#allocation5 + $0x40] sm:$0xff]
    %v55 = vld [vmem:[#allocation5 + $0x48] sm:$0xff]
    %v56 = vld [vmem:[#allocation5 + $0x50] sm:$0xff]
    %v57 = vld [vmem:[#allocation5 + $0x58] sm:$0xff]
    %v58 = vld [vmem:[#allocation5 + $0x60] sm:$0xff]
    %v59 = vld [vmem:[#allocation5 + $0x68] sm:$0xff]
    %v60 = vld [vmem:[#allocation5 + $0x70] sm:$0xff]
    %v61 = vld [vmem:[#allocation5 + $0x78] sm:$0xff]
    %v62 = vld [vmem:[#allocation5 + $0x80] sm:$0xff]
    %v63 = vld [vmem:[#allocation5 + $0x88] sm:$0xff]
    %v64 = vld [vmem:[#allocation5 + $0x90] sm:$0xff]
    %v65 = vld [vmem:[#allocation5 + $0x98] sm:$0xff]
    %v66 = vld [vmem:[#allocation5 + $0xa0] sm:$0xff]
    %v67 = vld [vmem:[#allocation5 + $0xa8] sm:$0xff]
    %v68 = vld [vmem:[#allocation5 + $0xb0] sm:$0xff]
    %v69 = vld [vmem:[#allocation5 + $0xb8] sm:$0xff]
    %v70 = vld [vmem:[#allocation5 + $0xc0] sm:$0xff]
    %v71 = vld [vmem:[#allocation5 + $0xc8] sm:$0xff]
    %v72 = vld [vmem:[#allocation5 + $0xd0] sm:$0xff]
    %v73 = vld [vmem:[#allocation5 + $0xd8] sm:$0xff]
    %v74 = vld [vmem:[#allocation5 + $0xe0] sm:$0xff]
    %v75 = vld [vmem:[#allocation5 + $0xe8] sm:$0xff]
    %v76 = vld [vmem:[#allocation5 + $0xf0] sm:$0xff]
    %v77 = vld [vmem:[#allocation5 + $0xf8] sm:$0xff]
    %v110 = vunpack.c.l.b16 %v46
    %v111 = vunpack.c.h.b16 %v46
    %v112 = vunpack.c.l.b16 %v47
    %v113 = vunpack.c.h.b16 %v47
    %v114 = vunpack.c.l.b16 %v48
    %v115 = vunpack.c.h.b16 %v48
    %v116 = vunpack.c.l.b16 %v49
    %v117 = vunpack.c.h.b16 %v49
    %v118 = vunpack.c.l.b16 %v50
    %v119 = vunpack.c.h.b16 %v50
    %v120 = vunpack.c.l.b16 %v51
    %v121 = vunpack.c.h.b16 %v51
    %v122 = vunpack.c.l.b16 %v52
    %v123 = vunpack.c.h.b16 %v52
    %v124 = vunpack.c.l.b16 %v53
    %v125 = vunpack.c.h.b16 %v53
    %v126 = vunpack.c.l.b16 %v54
    %v127 = vunpack.c.h.b16 %v54
    %v128 = vunpack.c.l.b16 %v55
    %v129 = vunpack.c.h.b16 %v55
    %v130 = vunpack.c.l.b16 %v56
    %v131 = vunpack.c.h.b16 %v56
    %v132 = vunpack.c.l.b16 %v57
    %v133 = vunpack.c.h.b16 %v57
    %v134 = vunpack.c.l.b16 %v58
    %v135 = vunpack.c.h.b16 %v58
    %v136 = vunpack.c.l.b16 %v59
    %v137 = vunpack.c.h.b16 %v59
    %v138 = vunpack.c.l.b16 %v60
    %v139 = vunpack.c.h.b16 %v60
    %v140 = vunpack.c.l.b16 %v61
    %v141 = vunpack.c.h.b16 %v61
    %v142 = vunpack.c.l.b16 %v62
    %v143 = vunpack.c.h.b16 %v62
    %v144 = vunpack.c.l.b16 %v63
    %v145 = vunpack.c.h.b16 %v63
    %v146 = vunpack.c.l.b16 %v64
    %v147 = vunpack.c.h.b16 %v64
    %v148 = vunpack.c.l.b16 %v65
    %v149 = vunpack.c.h.b16 %v65
    %v150 = vunpack.c.l.b16 %v66
    %v151 = vunpack.c.h.b16 %v66
    %v152 = vunpack.c.l.b16 %v67
    %v153 = vunpack.c.h.b16 %v67
    %v154 = vunpack.c.l.b16 %v68
    %v155 = vunpack.c.h.b16 %v68
    %v156 = vunpack.c.l.b16 %v69
    %v157 = vunpack.c.h.b16 %v69
    %v158 = vunpack.c.l.b16 %v70
    %v159 = vunpack.c.h.b16 %v70
    %v160 = vunpack.c.l.b16 %v71
    %v161 = vunpack.c.h.b16 %v71
    %v162 = vunpack.c.l.b16 %v72
    %v163 = vunpack.c.h.b16 %v72
    %v164 = vunpack.c.l.b16 %v73
    %v165 = vunpack.c.h.b16 %v73
    %v166 = vunpack.c.l.b16 %v74
    %v167 = vunpack.c.h.b16 %v74
    %v168 = vunpack.c.l.b16 %v75
    %v169 = vunpack.c.h.b16 %v75
    %v170 = vunpack.c.l.b16 %v76
    %v171 = vunpack.c.h.b16 %v76
    %v172 = vunpack.c.l.b16 %v77
    %v173 = vunpack.c.h.b16 %v77
    %v174 = vpack.c.b16 %v112, %v110
    %v175 = vpack.c.b16 %v113, %v111
    %v176 = vpack.c.b16 %v116, %v114
    %v177 = vpack.c.b16 %v117, %v115
    %v178 = vpack.c.b16 %v120, %v118
    %v179 = vpack.c.b16 %v121, %v119
    %v180 = vpack.c.b16 %v124, %v122
    %v181 = vpack.c.b16 %v125, %v123
    %v182 = vpack.c.b16 %v128, %v126
    %v183 = vpack.c.b16 %v129, %v127
    %v184 = vpack.c.b16 %v132, %v130
    %v185 = vpack.c.b16 %v133, %v131
    %v186 = vpack.c.b16 %v136, %v134
    %v187 = vpack.c.b16 %v137, %v135
    %v188 = vpack.c.b16 %v140, %v138
    %v189 = vpack.c.b16 %v141, %v139
    %v190 = vpack.c.b16 %v144, %v142
    %v191 = vpack.c.b16 %v145, %v143
    %v192 = vpack.c.b16 %v148, %v146
    %v193 = vpack.c.b16 %v149, %v147
    %v194 = vpack.c.b16 %v152, %v150
    %v195 = vpack.c.b16 %v153, %v151
    %v196 = vpack.c.b16 %v156, %v154
    %v197 = vpack.c.b16 %v157, %v155
    %v198 = vpack.c.b16 %v160, %v158
    %v199 = vpack.c.b16 %v161, %v159
    %v200 = vpack.c.b16 %v164, %v162
    %v201 = vpack.c.b16 %v165, %v163
    %v202 = vpack.c.b16 %v168, %v166
    %v203 = vpack.c.b16 %v169, %v167
    %v204 = vpack.c.b16 %v172, %v170
    %v205 = vpack.c.b16 %v173, %v171
    %238 = vmatpush.bf16.msra.mxu0 %v188
    %239 = vmatpush.bf16.msra.mxu0 %v186
    %240 = vmatpush.bf16.msra.mxu0 %v184
    %241 = vmatpush.bf16.msra.mxu0 %v182
    %242 = vmatpush.bf16.msra.mxu0 %v180
    %243 = vmatpush.bf16.msra.mxu0 %v178
    %244 = vmatpush.bf16.msra.mxu0 %v176
    %245 = vmatpush.bf16.msra.mxu0 %v174
    %246 = vmatmul.bf16.gmra.mxu0 %v44
    %v247 = vpop.f32.mrf.mxu0
    %v248 = vadd.f32 0.0, %v247
    %v249 = vpop.f32.mrf.mxu0
    %250 = vdwg.mxu0
    %251 = vmatpush.bf16.msra.mxu0 %v204
    %252 = vmatpush.bf16.msra.mxu0 %v202
    %253 = vmatpush.bf16.msra.mxu0 %v200
    %254 = vmatpush.bf16.msra.mxu0 %v198
    %255 = vmatpush.bf16.msra.mxu0 %v196
    %256 = vmatpush.bf16.msra.mxu0 %v194
    %257 = vmatpush.bf16.msra.mxu0 %v192
    %258 = vmatpush.bf16.msra.mxu0 %v190
    %259 = vmatmul.bf16.gmra.mxu0 %v45
    %v260 = vpop.f32.mrf.mxu0
    %v261 = vadd.f32 %v248, %v260
    %v262 = vpop.f32.mrf.mxu0
    %263 = vdwg.mxu0
    %264 = vmatpush.bf16.msra.mxu0 %v189
    %265 = vmatpush.bf16.msra.mxu0 %v187
    %266 = vmatpush.bf16.msra.mxu0 %v185
    %267 = vmatpush.bf16.msra.mxu0 %v183
    %268 = vmatpush.bf16.msra.mxu0 %v181
    %269 = vmatpush.bf16.msra.mxu0 %v179
    %270 = vmatpush.bf16.msra.mxu0 %v177
    %271 = vmatpush.bf16.msra.mxu0 %v175
    %272 = vmatmul.bf16.gmra.mxu0 %v44
    %v273 = vpop.f32.mrf.mxu0
    %v274 = vadd.f32 0.0, %v273
    %v275 = vpop.f32.mrf.mxu0
    %276 = vdwg.mxu0
    %277 = vmatpush.bf16.msra.mxu0 %v205
    %278 = vmatpush.bf16.msra.mxu0 %v203
    %279 = vmatpush.bf16.msra.mxu0 %v201
    %280 = vmatpush.bf16.msra.mxu0 %v199
    %281 = vmatpush.bf16.msra.mxu0 %v197
    %282 = vmatpush.bf16.msra.mxu0 %v195
    %283 = vmatpush.bf16.msra.mxu0 %v193
    %284 = vmatpush.bf16.msra.mxu0 %v191
    %285 = vmatmul.bf16.gmra.mxu0 %v45
    %v286 = vpop.f32.mrf.mxu0
    %v287 = vadd.f32 %v274, %v286
    %v288 = vpop.f32.mrf.mxu0
    %289 = vdwg.mxu0
    %290 = vst [vmem:[#allocation7] sm:$0xff] %v261
    %291 = vst [vmem:[#allocation7 + $0x8] sm:$0xff] %v287
    // Predicated region
    $region18: #{tpu_custom_call.1} parent=1 // pred_check
      _
    $region19: #{tpu_custom_call.1} parent=1 // pred_check_branch
      %293 = sbr.rel (0) target = $region21
    $region20: #{tpu_custom_call.1} parent=1 // pred_region
      %295 = vsyncadd [#allocation4], 0
      %s297 = sshll.u32 [#allocation7], 4
      %s298 = int_to_ptr.vmem [resolvable:$true] %s297
      %s299 = sshll.u32 %s2, 4
      %s300 = int_to_ptr.hbm [resolvable:$true] %s299
      %302 = dma.vmem_to_hbm [thread:$0]  %s298, 256, %s300, [#allocation4]
    $region21: #{tpu_custom_call.1} parent=1 // pred_fallthru
      _
    // Predicated region
    $region22: #{tpu_custom_call.1} parent=1 // pred_check
      _
    $region23: #{tpu_custom_call.1} parent=1 // pred_check_branch
      %304 = sbr.rel (0) target = $region25
    $region24: #{tpu_custom_call.1} parent=1 // pred_region
      %306 = dma.done [#allocation4], 256
    $region25: #{tpu_custom_call.1} parent=1 // pred_fallthru
      _
    %307 = vsyncpa [#allocation3], 1
    %308 = vsyncpa [#allocation6], 1
    %309 = vsyncpa [#allocation4], 1

</llo_original>
